<compile_context>
chip_gen: v6e
topology: v6e:2x2x1
jax: 0.10.0
libtpu: 0.0.40
codegen_flags: <defaults>
</compile_context>

<pallas_src>
import jax
import jax.numpy as jnp
from jax.experimental import pallas as pl
from jax.experimental.pallas import tpu as pltpu


def _round_up(x: int, m: int) -> int:
    return ((x + m - 1) // m) * m


def prepare_linear_params(weight, bias, compute_dtype=jnp.bfloat16):
    """One-time parameter prep (amortized across all forward calls).

    weight: (Out, In) PyTorch layout -> (In, Out) in compute_dtype for the MXU.
    bias:   (Out,)                   -> (1, Out) float32 (added post-accum).
    """
    wt = jnp.asarray(weight).T.astype(compute_dtype)
    b2 = jnp.asarray(bias).astype(jnp.float32).reshape(1, -1)
    return wt, b2


def _fused_linear_kernel(x_ref, wt_ref, b_ref, o_ref):
    # Whole problem in one VMEM block: single MXU pass + bias add.
    o_ref[...] = (
        jnp.dot(x_ref[...], wt_ref[...], preferred_element_type=jnp.float32)
        + b_ref[...]
    ).astype(o_ref.dtype)


def _tiled_linear_kernel(x_ref, wt_ref, b_ref, o_ref):
    # x_ref: (tm, tk) bf16, wt_ref: (tk, tn) bf16, b_ref: (1, tn) f32,
    # o_ref: (tm, tn) f32.  The output block stays resident across the
    # innermost k axis, so it doubles as the accumulator (no scratch needed
    # for an f32 output); it is initialized to the broadcast bias at k == 0.
    k = pl.program_id(2)

    @pl.when(k == 0)
    def _():
        o_ref[...] = jnp.broadcast_to(b_ref[...], o_ref.shape).astype(o_ref.dtype)

    o_ref[...] += jnp.dot(
        x_ref[...], wt_ref[...], preferred_element_type=jnp.float32
    )


def simple_model_forward(x, wt, b2, *, tm=256, tn=256, tk=512):
    """y = x @ W^T + b (torch.nn.Linear semantics), W pre-transposed.

    x:  (B, In)   any float dtype (cast to wt.dtype for the MXU)
    wt: (In, Out) compute dtype, from prepare_linear_params
    b2: (1, Out)  float32, from prepare_linear_params
    Tile defaults target v6e/v7x (256-wide MXU); sweep per generation.
    """
    B, In = x.shape
    In_w, Out = wt.shape
    assert In == In_w, "weight inner dim must match x feature dim"
    assert b2.shape == (1, Out)

    x_c = x.astype(wt.dtype)

    # ---- single-tile fast path (covers the spec's tiny test shape) ---------
    if B <= tm and Out <= tn and In <= tk:
        out = pl.pallas_call(
            _fused_linear_kernel,
            out_shape=jax.ShapeDtypeStruct((B, Out), jnp.float32),
            grid=(1,),
            in_specs=[
                pl.BlockSpec((B, In), lambda i: (0, 0)),
                pl.BlockSpec((In, Out), lambda i: (0, 0)),
                pl.BlockSpec((1, Out), lambda i: (0, 0)),
            ],
            out_specs=pl.BlockSpec((B, Out), lambda i: (0, 0)),
        )(x_c, wt, b2)
        return out.astype(x.dtype)

    # ---- tiled (M, N, K) path -----------------------------------------------
    # Only the contraction axis needs zero padding for correctness; M/N use
    # cdiv grids with partial edge blocks (out-of-bounds output rows/cols are
    # never written back, so garbage there is harmless).
    Kp = _round_up(In, tk)
    if Kp != In:
        x_c = jnp.pad(x_c, ((0, 0), (0, Kp - In)))
        wt = jnp.pad(wt, ((0, Kp - In), (0, 0)))

    mg, ng, kg = pl.cdiv(B, tm), pl.cdiv(Out, tn), Kp // tk
    bytes_accessed = (
        x_c.size * x_c.dtype.itemsize * ng      # x re-streamed per N tile
        + wt.size * wt.dtype.itemsize * mg      # W re-streamed per M tile
        + b2.size * 4
        + B * Out * 4
    )

    out = pl.pallas_call(
        _tiled_linear_kernel,
        out_shape=jax.ShapeDtypeStruct((B, Out), jnp.float32),
        grid_spec=pltpu.PrefetchScalarGridSpec(
            num_scalar_prefetch=0,
            grid=(mg, ng, kg),
            in_specs=[
                pl.BlockSpec((tm, tk), lambda i, j, k: (i, k)),   # x tile
                pl.BlockSpec((tk, tn), lambda i, j, k: (k, j)),   # W^T tile
                pl.BlockSpec((1, tn), lambda i, j, k: (0, j)),    # bias tile
            ],
            out_specs=pl.BlockSpec((tm, tn), lambda i, j, k: (i, j)),
        ),
        compiler_params=pltpu.CompilerParams(
            dimension_semantics=("parallel", "parallel", "arbitrary"),
        ),
        cost_estimate=pl.CostEstimate(
            flops=2 * B * Out * Kp,
            transcendentals=0,
            bytes_accessed=bytes_accessed,
        ),
    )(x_c, wt, b2)
    return out.astype(x.dtype)


if __name__ == "__main__":
    key = jax.random.PRNGKey(0)

    def make_case(k, batch, in_f, out_f):
        kx, kw, kb = jax.random.split(k, 3)
        bound = 1.0 / (in_f ** 0.5)  # nn.Linear default init range
        w = jax.random.uniform(kw, (out_f, in_f), minval=-bound, maxval=bound,
                               dtype=jnp.float32)
        b = jax.random.uniform(kb, (out_f,), minval=-bound, maxval=bound,
                               dtype=jnp.float32)
        x = jax.random.normal(kx, (batch, in_f), dtype=jnp.float32)
        return x, w, b

    k1, k2 = jax.random.split(key)

    # 1) Spec-sized tiny shape (B=8, In=32, Out=16) -> single-block fast path.
    x, w, b = make_case(k1, 8, 32, 16)
    wt, b2 = prepare_linear_params(w, b)
    y = simple_model_forward(x, wt, b2)
    jax.block_until_ready(y)
    ref = x @ w.T + b
    assert y.shape == ref.shape
    assert jnp.allclose(y, ref, atol=2e-2, rtol=2e-2), "tiny-path mismatch"

    # 2) Larger shape exercising the tiled (M, N, K) path: partial M/N edge
    #    blocks (no M/N padding) and K zero-padding (640 -> 1024).
    x, w, b = make_case(k2, 300, 640, 384)
    wt, b2 = prepare_linear_params(w, b)
    y = simple_model_forward(x, wt, b2, tm=256, tn=256, tk=512)
    jax.block_until_ready(y)
    ref = x @ w.T + b
    assert y.shape == ref.shape
    assert jnp.allclose(y, ref, atol=2e-2, rtol=2e-2), "tiled-path mismatch"

    print("KERNEL_OK")
</pallas_src>

<mosaic_0001>
module attributes {stable_mosaic.version = 11 : i64} {
  func.func @_fused_linear_kernel(%arg0: i32, %arg1: memref<8x32xbf16, #tpu.memory_space<vmem>>, %arg2: memref<32x16xbf16, #tpu.memory_space<vmem>>, %arg3: memref<1x16xf32, #tpu.memory_space<vmem>>, %arg4: memref<8x16xf32, #tpu.memory_space<vmem>>) attributes {dimension_semantics = [#tpu.dimension_semantics<arbitrary>], iteration_bounds = array<i64: 1>, scalar_prefetch = 0 : i64, scratch_operands = 0 : i64, tpu.core_type = #tpu.core_type<tc>, window_params = [{pipeline_mode = #tpu.pipeline_mode<synchronous>, transform_indices = @transform_0, window_bounds = array<i64: 8, 32>}, {pipeline_mode = #tpu.pipeline_mode<synchronous>, transform_indices = @transform_1, window_bounds = array<i64: 32, 16>}, {pipeline_mode = #tpu.pipeline_mode<synchronous>, transform_indices = @transform_2, window_bounds = array<i64: 1, 16>}, {pipeline_mode = #tpu.pipeline_mode<synchronous>, transform_indices = @transform_3, window_bounds = array<i64: 8, 16>}]} {
    %c0 = arith.constant 0 : index
    %c0_0 = arith.constant 0 : index
    %0 = vector.load %arg1[%c0, %c0_0] : memref<8x32xbf16, #tpu.memory_space<vmem>>, vector<8x32xbf16>
    %c0_1 = arith.constant 0 : index
    %c0_2 = arith.constant 0 : index
    %1 = vector.load %arg2[%c0_1, %c0_2] : memref<32x16xbf16, #tpu.memory_space<vmem>>, vector<32x16xbf16>
    %cst = arith.constant dense<0.000000e+00> : vector<8x16xf32>
    %2 = tpu.matmul %0, %1, %cst {dimension_numbers = #tpu.dot_dimension_numbers<[1], [0], [0], [1], [0, 0, 1, 1], [], []>} : vector<8x32xbf16>, vector<32x16xbf16>, vector<8x16xf32> -> vector<8x16xf32>
    %c0_3 = arith.constant 0 : index
    %c0_4 = arith.constant 0 : index
    %3 = vector.load %arg3[%c0_3, %c0_4] : memref<1x16xf32, #tpu.memory_space<vmem>>, vector<1x16xf32>
    %4 = vector.broadcast %3 : vector<1x16xf32> to vector<8x16xf32>
    %5 = arith.addf %2, %4 : vector<8x16xf32>
    %c0_5 = arith.constant 0 : index
    %c0_6 = arith.constant 0 : index
    %6 = vector.load %arg4[%c0_5, %c0_6] : memref<8x16xf32, #tpu.memory_space<vmem>>, vector<8x16xf32>
    tpu.vector_store %arg4[%c0_5, %c0_6], %5 {strides = array<i32>} : memref<8x16xf32, #tpu.memory_space<vmem>>, vector<8x16xf32>,
    return
  }
  func.func @transform_0(%arg0: i32) -> (i32, i32) {
    %c0_i32 = arith.constant 0 : i32
    %c0_i32_0 = arith.constant 0 : i32
    %c0_i32_1 = arith.constant 0 : i32
    return %c0_i32, %c0_i32_0 : i32, i32
  }
  func.func @transform_1(%arg0: i32) -> (i32, i32) {
    %c0_i32 = arith.constant 0 : i32
    %c0_i32_0 = arith.constant 0 : i32
    %c0_i32_1 = arith.constant 0 : i32
    return %c0_i32, %c0_i32_0 : i32, i32
  }
  func.func @transform_2(%arg0: i32) -> (i32, i32) {
    %c0_i32 = arith.constant 0 : i32
    %c0_i32_0 = arith.constant 0 : i32
    %c0_i32_1 = arith.constant 0 : i32
    return %c0_i32, %c0_i32_0 : i32, i32
  }
  func.func @transform_3(%arg0: i32) -> (i32, i32) {
    %c0_i32 = arith.constant 0 : i32
    %c0_i32_0 = arith.constant 0 : i32
    %c0_i32_1 = arith.constant 0 : i32
    return %c0_i32, %c0_i32_0 : i32, i32
  }
}

</mosaic_0001>

<llo_original>
// kernel: tpu_custom_call.1
$region0: #{tpu_custom_call.1}
  #allocation0 [shape = 'u32[]', space=smem, size = 0x4, offset = 0x4, fixed_abs, tag = 'smem constant byte address 0x4 - core index']
  #allocation1 [shape = 'u32[144,128]{1,0:T(1,128)}', space=vmem, size = 0x12000, scoped, tag = 'internal scratch']
  %s0 = inlined_call_operand.vmem [shape: bf16[8,32], index: 0, kind: input, shape index: {}]
  %s1 = inlined_call_operand.vmem [shape: bf16[32,16], index: 1, kind: input, shape index: {}]
  %s2 = inlined_call_operand.vmem [shape: f32[1,16], index: 2, kind: input, shape index: {}]
  %s3 = inlined_call_operand.hbm [shape: f32[8,16], index: 3, kind: output, shape index: {}]
  %s4 = sld [smem:[#allocation0]]
  $region22: #{tpu_custom_call.1} parent=0
    _
  %s6 = ssub.s32 1, %s4
  %s7 = scalar_select 0, %s6, %s4
  $region1: #{tpu_custom_call.1} parent=0
    #allocation2 [shape = 'u8[4096]{0}', space=vmem, size = 0x1000, scoped, tag = 'output window, operand 0, single buffered']
    #allocation3 [shape = 's32[1]{0}', space=sflag, size = 0x4, scoped, tag = 'scoped memory for tpu_custom_call.1']
    %8 = vsyncpa [#allocation3], 0
    // Predicated region
    $region2: #{tpu_custom_call.1} parent=1 // pred_check
      _
    $region3: #{tpu_custom_call.1} parent=1 // pred_check_branch
      %10 = sbr.rel (0) target = $region5
    $region4: #{tpu_custom_call.1} parent=1 // pred_region
      _
    $region5: #{tpu_custom_call.1} parent=1 // pred_fallthru
      _
    // Predicated region
    $region6: #{tpu_custom_call.1} parent=1 // pred_check
      _
    $region7: #{tpu_custom_call.1} parent=1 // pred_check_branch
      %12 = sbr.rel (0) target = $region9
    $region8: #{tpu_custom_call.1} parent=1 // pred_region
      _
    $region9: #{tpu_custom_call.1} parent=1 // pred_fallthru
      _
    // Predicated region
    $region10: #{tpu_custom_call.1} parent=1 // pred_check
      _
    $region11: #{tpu_custom_call.1} parent=1 // pred_check_branch
      %14 = sbr.rel (0) target = $region13
    $region12: #{tpu_custom_call.1} parent=1 // pred_region
      _
    $region13: #{tpu_custom_call.1} parent=1 // pred_fallthru
      _
    %v16 = vld [vmem:[%s0] sm:$0xf]
    %v17 = vld [vmem:[%s1] sm:$0xf]
    %v18 = vld [vmem:[%s1 + $0x4] sm:$0xf]
    %v19 = vld [vmem:[%s1 + $0x8] sm:$0xf]
    %v20 = vld [vmem:[%s1 + $0xc] sm:$0xf]
    %v21 = vld [vmem:[%s2] sm:$0x1]
    %v23 = vlaneseq
    %v24 = vshrl.u32 %v23, 7
    %v25 = vsub.s32 0, %v24
    %v26 = vrot.slane %v21, %v25
    %v32 = vunpack.c.l.b16 %v17
    %v33 = vunpack.c.l.b16 %v18
    %v34 = vunpack.c.l.b16 %v19
    %v35 = vunpack.c.l.b16 %v20
    %v36 = vpack.c.b16 %v33, %v32
    %v37 = vpack.c.b16 %v35, %v34
    %vm40 = vcmask 261120
    %v42 = vsel %vm40, %v16, 0
    %44 = vmatprep.subr.bf16.mxu0 0
    %45 = vmatpush1.bf16.msra.mxu0 0
    %46 = vmatprep.subr.bf16.mxu0 0
    %47 = vmatpush1.bf16.msra.mxu0 0
    %48 = vmatprep.subr.bf16.mxu0 0
    %49 = vmatpush1.bf16.msra.mxu0 0
    %50 = vmatprep.subr.bf16.mxu0 0
    %51 = vmatpush1.bf16.msra.mxu0 0
    %52 = vmatprep.subr.bf16.mxu0 0
    %53 = vmatpush1.bf16.msra.mxu0 0
    %54 = vmatprep.subr.bf16.mxu0 0
    %55 = vmatpush1.bf16.msra.mxu0 0
    %56 = vmatprep.subr.bf16.mxu0 0
    %57 = vmatpush1.bf16.msra.mxu0 %v37
    %58 = vmatprep.subr.bf16.mxu0 0
    %59 = vmatpush1.bf16.msra.mxu0 %v36
    %60 = vmatprep.subr.bf16.mxu0 0
    %61 = vmatpush2.bf16.msra.mxu0 0
    %62 = vmatprep.subr.bf16.mxu0 0
    %63 = vmatpush2.bf16.msra.mxu0 0
    %64 = vmatprep.subr.bf16.mxu0 0
    %65 = vmatpush2.bf16.msra.mxu0 0
    %66 = vmatprep.subr.bf16.mxu0 0
    %67 = vmatpush2.bf16.msra.mxu0 0
    %68 = vmatprep.subr.bf16.mxu0 0
    %69 = vmatpush2.bf16.msra.mxu0 0
    %70 = vmatprep.subr.bf16.mxu0 0
    %71 = vmatpush2.bf16.msra.mxu0 0
    %72 = vmatprep.subr.bf16.mxu0 0
    %73 = vmatpush2.bf16.msra.mxu0 0
    %74 = vmatprep.subr.bf16.mxu0 0
    %75 = vmatpush2.bf16.msra.mxu0 0
    %76 = vmatprep.mubr.bf16.mxu0 0
    %77 = vmatmul.mubr.bf16.gmra.mxu0 %v42
    %v78 = vpop.f32.mrf.mxu0
    %v79 = vadd.f32 %v26, %v78
    %v80 = vpop.f32.mrf.mxu0
    %v81 = vpop.f32.mrf.mxu0
    %v82 = vpop.f32.mrf.mxu0
    %83 = vdwg.mxu0
    %vm84 = vcmask 130048
    %85 = vst.msk [vmem:[#allocation2] sm:$0xff] %vm84, %v79
    // Predicated region
    $region14: #{tpu_custom_call.1} parent=1 // pred_check
      _
    $region15: #{tpu_custom_call.1} parent=1 // pred_check_branch
      %87 = sbr.rel (0) target = $region17
    $region16: #{tpu_custom_call.1} parent=1 // pred_region
      %s89 = ssub.s32 128, 128
      %90 = vsyncadd [#allocation3], %s89
      %s92 = sshll.u32 [#allocation2], 4
      %s93 = int_to_ptr.vmem [resolvable:$true] %s92
      %95 = dma.vmem_to_hbm [thread:$0]  %s93, 128, %s3, [#allocation3]
    $region17: #{tpu_custom_call.1} parent=1 // pred_fallthru
      _
    // Predicated region
    $region18: #{tpu_custom_call.1} parent=1 // pred_check
      _
    $region19: #{tpu_custom_call.1} parent=1 // pred_check_branch
      %97 = sbr.rel (0) target = $region21
    $region20: #{tpu_custom_call.1} parent=1 // pred_region
      %98 = dma.done [#allocation3], 128
    $region21: #{tpu_custom_call.1} parent=1 // pred_fallthru
      _
    %99 = vsyncpa [#allocation3], 1

</llo_original>
